<compile_context>
chip_gen: v7x
topology: tpu7x:2x2x1
jax: 0.10.0
libtpu: 0.0.40
codegen_flags: <defaults>
</compile_context>

<pallas_src>
import jax
import jax.numpy as jnp
from jax.experimental import pallas as pl
from jax.experimental.pallas import tpu as pltpu

_BN_EPS = 1e-5
_VMEM_LIMIT = 32 * 1024 * 1024   # explicit scoped-VMEM budget, safe on v5e/v6e/v7x


def _round_up(n, m):
    return ((n + m - 1) // m) * m


# ---------------------------------------------------------------------------
# Kernels
# ---------------------------------------------------------------------------
def _fused_aspp_kernel(tap_branch_ref, tap_last_ref,        # scalar prefetch (SMEM)
                       x_ref, w_ref, bshift_ref, wproj_ref, extra_ref,
                       o_ref, bacc_ref, pacc_ref):
    """One spatial tile of the whole ASPP.

    out = relu( sum_b Wproj[b] @ relu( sum_{t in b} W[t] @ X[t] + shift[b] )
                + extra )              with the tap axis as grid reduction axis.
    """
    t = pl.program_id(2)

    @pl.when(t == 0)
    def _():
        bacc_ref[...] = jnp.zeros_like(bacc_ref)
        pacc_ref[...] = jnp.zeros_like(pacc_ref)

    # Accumulate the current tap of the current branch on the MXU.
    bacc_ref[...] += jnp.dot(w_ref[0], x_ref[0],
                             preferred_element_type=jnp.float32)

    # Branch boundary: BN shift + ReLU, fold into the projection accumulator,
    # reset the branch accumulator. Branch activations never leave VMEM.
    @pl.when(tap_last_ref[t] == 1)
    def _():
        y = jnp.maximum(bacc_ref[...] + bshift_ref[0], 0.0)
        pacc_ref[...] += jnp.dot(wproj_ref[0], y,
                                 preferred_element_type=jnp.float32)
        bacc_ref[...] = jnp.zeros_like(bacc_ref)

    # Last tap overall: add pooled-branch contribution + projection BN shift,
    # final ReLU, lane-dense store of the output tile.
    @pl.when(t == pl.num_programs(2) - 1)
    def _():
        o_ref[0] = jnp.maximum(pacc_ref[...] + extra_ref[0], 0.0)


def _make_pool_kernel(inv_n):
    """Row-wise mean over the lane (spatial) axis, tiled reduction."""
    def kernel(x_ref, o_ref):
        m = pl.program_id(0)

        @pl.when(m == 0)
        def _():
            o_ref[...] = jnp.zeros_like(o_ref)

        o_ref[...] += jnp.sum(x_ref[...], axis=1, keepdims=True)

        @pl.when(m == pl.num_programs(0) - 1)
        def _():
            o_ref[...] = o_ref[...] * inv_n

    return kernel


# ---------------------------------------------------------------------------
# Tiling / parameter-folding helpers (wrapper-side)
# ---------------------------------------------------------------------------
def _pick_lane_tile(hwp, c_in, c_out, budget_bytes=16 * 1024 * 1024):
    """Largest lane tile (multiple of 128 dividing hwp) within a VMEM budget."""
    per_lane = 4 * (2 * c_in + 4 * c_out)   # dbl-buffered x + dbl out + 2 scratch
    for t in (2048, 1024, 512, 256, 128):
        if hwp % t == 0 and t * per_lane <= budget_bytes:
            return t
    return 128


def _pick_pool_tile(hwp, n_rows, budget_bytes=8 * 1024 * 1024):
    for t in (2048, 1024, 512, 256, 128):
        if hwp % t == 0 and 2 * n_rows * t * 4 <= budget_bytes:
            return t
    return 128


def _fold_bn(w, bn):
    """Fold eval-mode BatchNorm into a bias-free conv weight (out-ch axis 0)."""
    gamma, beta, mean, var = bn
    scale = gamma * jax.lax.rsqrt(var + _BN_EPS)
    w_f = w * scale.reshape((-1,) + (1,) * (w.ndim - 1))
    shift = beta - mean * scale
    return w_f, shift.reshape(-1, 1)


def _global_avg_pool(x):
    """(B, C, H, W) -> (B, C) mean over H, W via a tiled Pallas reduction."""
    B, C, H, W = x.shape
    HW = H * W
    HWp = _round_up(HW, 128)
    rows = x.reshape(B * C, HW)
    if HWp != HW:
        rows = jnp.pad(rows, ((0, 0), (0, HWp - HW)))
    tm = _pick_pool_tile(HWp, B * C)
    pooled = pl.pallas_call(
        _make_pool_kernel(1.0 / HW),
        out_shape=jax.ShapeDtypeStruct((B * C, 1), jnp.float32),
        grid_spec=pltpu.PrefetchScalarGridSpec(
            num_scalar_prefetch=0,
            grid=(HWp // tm,),
            in_specs=[pl.BlockSpec((B * C, tm), lambda m: (0, m))],
            out_specs=pl.BlockSpec((B * C, 1), lambda m: (0, 0)),
        ),
        compiler_params=pltpu.CompilerParams(
            dimension_semantics=("arbitrary",),
            vmem_limit_bytes=_VMEM_LIMIT,
        ),
    )(rows)
    return pooled.reshape(B, C)


# ---------------------------------------------------------------------------
# ASPP forward
# ---------------------------------------------------------------------------
def aspp_forward(x, params, atrous_rates):
    """Eval-mode ASPP forward. x: (B, C_in, H, W) f32 -> (B, C_out, H, W)."""
    x = x.astype(jnp.float32)
    B, C_in, H, W = x.shape
    HW = H * W
    HWp = _round_up(HW, 128)
    C_out = params["w0"].shape[0]
    R = len(atrous_rates)
    n_mm = 1 + R                 # matmul branches: 1x1 + one per atrous rate
    T = 1 + 9 * R                # total taps across the matmul branches

    # ---- fold eval-mode BN into conv weights ----
    w0, s0 = _fold_bn(params["w0"], params["bn0"])            # (C_out, C_in)
    w_tap_parts = [w0[None]]
    shifts = [s0]
    for i in range(R):
        w3, s3 = _fold_bn(params[f"w{i + 1}"], params[f"bn{i + 1}"])  # (C_out,C_in,3,3)
        w_tap_parts.append(jnp.transpose(w3, (2, 3, 0, 1)).reshape(9, C_out, C_in))
        shifts.append(s3)
    w_taps = jnp.concatenate(w_tap_parts, axis=0)             # (T, C_out, C_in)
    branch_shift = jnp.stack(shifts, axis=0)                  # (n_mm, C_out, 1)

    # ---- projection 1x1 conv, split per concatenated branch ----
    wproj_f, sproj = _fold_bn(params["wproj"], params["bnproj"])
    wproj_b = jnp.transpose(wproj_f.reshape(C_out, n_mm + 1, C_out), (1, 0, 2))
    wproj_mm = wproj_b[:n_mm]                                 # (n_mm, C_out, C_out)
    wproj_pool = wproj_b[n_mm]                                # (C_out, C_out)

    # ---- pooling branch (tiny): Pallas global pool, XLA 1x1 conv + BN + ReLU,
    #      then its projection contribution + proj BN shift become a per-batch
    #      additive vector (bilinear upsample of a 1x1 map == broadcast). ----
    pooled = _global_avg_pool(x)                              # (B, C_in)
    wp, sp = _fold_bn(params["wp"], params["bnp"])            # (C_out, C_in)
    yp = jnp.maximum(pooled @ wp.T + sp[:, 0][None, :], 0.0)  # (B, C_out)
    extra = (yp @ wproj_pool.T + sproj[:, 0][None, :])[:, :, None]  # (B, C_out, 1)

    # ---- spatially shifted tap copies of x (zero padding), lane padded ----
    # TODO(synk): panosp.py's `_make_pad(dilation)` may implement panorama
    # (circular-width) padding; standard zero padding (same-size output) is
    # assumed here.
    taps = [x.reshape(B, C_in, HW)]
    for r in atrous_rates:
        xp = jnp.pad(x, ((0, 0), (0, 0), (r, r), (r, r)))
        for ky in range(3):
            for kx in range(3):
                taps.append(
                    xp[:, :, ky * r:ky * r + H, kx * r:kx * r + W].reshape(B, C_in, HW))
    x_taps = jnp.stack(taps, axis=0)                          # (T, B, C_in, HW)
    if HWp != HW:
        x_taps = jnp.pad(x_taps, ((0, 0), (0, 0), (0, 0), (0, HWp - HW)))
    x_taps = x_taps.reshape(T * B, C_in, HWp)

    # ---- tap -> branch schedule (scalar prefetched into SMEM) ----
    branch_ids, last_flags = [0], [1]
    for bi in range(1, n_mm):
        branch_ids += [bi] * 9
        last_flags += [0] * 8 + [1]
    tap_branch = jnp.asarray(branch_ids, dtype=jnp.int32)     # (T,)
    tap_last = jnp.asarray(last_flags, dtype=jnp.int32)       # (T,)

    tm = _pick_lane_tile(HWp, C_in, C_out)
    out = pl.pallas_call(
        _fused_aspp_kernel,
        out_shape=jax.ShapeDtypeStruct((B, C_out, HWp), jnp.float32),
        grid_spec=pltpu.PrefetchScalarGridSpec(
            num_scalar_prefetch=2,
            grid=(B, HWp // tm, T),                           # reduction axis last
            in_specs=[
                pl.BlockSpec((1, C_in, tm),
                             lambda b, m, t, tb, tl: (t * B + b, 0, m)),
                pl.BlockSpec((1, C_out, C_in),
                             lambda b, m, t, tb, tl: (t, 0, 0)),
                pl.BlockSpec((1, C_out, 1),
                             lambda b, m, t, tb, tl: (tb[t], 0, 0)),
                pl.BlockSpec((1, C_out, C_out),
                             lambda b, m, t, tb, tl: (tb[t], 0, 0)),
                pl.BlockSpec((1, C_out, 1),
                             lambda b, m, t, tb, tl: (b, 0, 0)),
            ],
            out_specs=pl.BlockSpec((1, C_out, tm),
                                   lambda b, m, t, tb, tl: (b, 0, m)),
            scratch_shapes=[pltpu.VMEM((C_out, tm), jnp.float32),   # branch acc
                            pltpu.VMEM((C_out, tm), jnp.float32)],  # proj acc
        ),
        compiler_params=pltpu.CompilerParams(
            dimension_semantics=("parallel", "parallel", "arbitrary"),
            vmem_limit_bytes=_VMEM_LIMIT,
        ),
    )(tap_branch, tap_last, x_taps, w_taps, branch_shift, wproj_mm, extra)

    # TODO(synk): Dropout(0.5) is identity in eval mode; training-mode dropout
    # (RNG masking) is not implemented.
    return out[:, :, :HW].reshape(B, C_out, H, W)


# ---------------------------------------------------------------------------
# Pure-XLA reference for verification
# ---------------------------------------------------------------------------
def _bn_ref(z, bn):
    gamma, beta, mean, var = bn
    scale = (gamma * jax.lax.rsqrt(var + _BN_EPS))[None, :, None, None]
    return (z - mean[None, :, None, None]) * scale + beta[None, :, None, None]


def _reference(x, params, atrous_rates):
    def conv1x1(z, w):
        return jnp.einsum("bchw,oc->bohw", z, w)

    def conv3x3(z, w, rate):
        return jax.lax.conv_general_dilated(
            z, w, window_strides=(1, 1),
            padding=((rate, rate), (rate, rate)),
            rhs_dilation=(rate, rate),
            dimension_numbers=("NCHW", "OIHW", "NCHW"))

    res = [jnp.maximum(_bn_ref(conv1x1(x, params["w0"]), params["bn0"]), 0.0)]
    for i, rate in enumerate(atrous_rates):
        z = conv3x3(x, params[f"w{i + 1}"], rate)
        res.append(jnp.maximum(_bn_ref(z, params[f"bn{i + 1}"]), 0.0))
    pooled = x.mean(axis=(2, 3), keepdims=True)               # (B, C, 1, 1)
    zp = jnp.maximum(_bn_ref(conv1x1(pooled, params["wp"]), params["bnp"]), 0.0)
    res.append(jnp.broadcast_to(zp, (x.shape[0], zp.shape[1],
                                     x.shape[2], x.shape[3])))
    cat = jnp.concatenate(res, axis=1)
    out = jnp.maximum(_bn_ref(conv1x1(cat, params["wproj"]), params["bnproj"]), 0.0)
    return out    # Dropout(0.5) is identity in eval mode.


# ---------------------------------------------------------------------------
# Self-test
# ---------------------------------------------------------------------------
if __name__ == "__main__":
    # Keep both the kernel's and the reference's f32 matmuls at full precision
    # so the comparison is tight.
    jax.config.update("jax_default_matmul_precision", "highest")

    def bn_params(k, c):
        kg, kb, km, kv = jax.random.split(k, 4)
        gamma = 1.0 + 0.1 * jax.random.normal(kg, (c,), jnp.float32)
        beta = 0.1 * jax.random.normal(kb, (c,), jnp.float32)
        mean = 0.1 * jax.random.normal(km, (c,), jnp.float32)
        var = jnp.abs(jax.random.normal(kv, (c,), jnp.float32)) + 0.5
        return (gamma, beta, mean, var)

    def make_case(key, B, C_in, H, W, atrous_rates):
        C_out = C_in // 2
        keys = jax.random.split(key, 8 + 2 * len(atrous_rates))
        x = jax.random.normal(keys[0], (B, C_in, H, W), jnp.float32)
        params = {
            "w0": 0.1 * jax.random.normal(keys[1], (C_out, C_in), jnp.float32),
            "bn0": bn_params(keys[2], C_out),
            "wp": 0.1 * jax.random.normal(keys[3], (C_out, C_in), jnp.float32),
            "bnp": bn_params(keys[4], C_out),
            "wproj": 0.1 * jax.random.normal(
                keys[5], (C_out, (2 + len(atrous_rates)) * C_out), jnp.float32),
            "bnproj": bn_params(keys[6], C_out),
        }
        for i in range(len(atrous_rates)):
            params[f"w{i + 1}"] = 0.1 * jax.random.normal(
                keys[7 + 2 * i], (C_out, C_in, 3, 3), jnp.float32)
            params[f"bn{i + 1}"] = bn_params(keys[8 + 2 * i], C_out)
        return x, params, C_out

    key = jax.random.PRNGKey(0)
    k1, k2 = jax.random.split(key)

    # Case 1: lane-aligned spatial size (primary shape).
    rates1 = (2, 4, 6)            # small rates so every 3x3 tap is exercised
    x1, p1, co1 = make_case(k1, 2, 8, 16, 16, rates1)
    out1 = jax.block_until_ready(aspp_forward(x1, p1, rates1))
    ref1 = _reference(x1, p1, rates1)
    assert out1.shape == (2, co1, 16, 16), out1.shape
    err1 = float(jnp.max(jnp.abs(out1 - ref1)))
    assert jnp.allclose(out1, ref1, atol=1e-3, rtol=1e-3), err1

    # Case 2: H*W not a multiple of 128 (exercises the lane-padding path).
    rates2 = (1, 2)
    x2, p2, co2 = make_case(k2, 1, 6, 12, 12, rates2)
    out2 = jax.block_until_ready(aspp_forward(x2, p2, rates2))
    ref2 = _reference(x2, p2, rates2)
    assert out2.shape == (1, co2, 12, 12), out2.shape
    err2 = float(jnp.max(jnp.abs(out2 - ref2)))
    assert jnp.allclose(out2, ref2, atol=1e-3, rtol=1e-3), err2

    print("KERNEL_OK")
</pallas_src>

<mosaic_0001>
module attributes {stable_mosaic.version = 11 : i64} {
  func.func @kernel(%arg0: i32, %arg1: memref<16x256xf32, #tpu.memory_space<vmem>>, %arg2: memref<16x1xf32, #tpu.memory_space<vmem>>) attributes {dimension_semantics = [#tpu.dimension_semantics<arbitrary>], iteration_bounds = array<i64: 1>, scalar_prefetch = 0 : i64, scratch_operands = 0 : i64, tpu.core_type = #tpu.core_type<tc>, window_params = [{transform_indices = @transform_0, window_bounds = array<i64: 16, 256>}, {pipeline_mode = #tpu.pipeline_mode<synchronous>, transform_indices = @transform_1, window_bounds = array<i64: 16, 1>}]} {
    %c0_i32 = arith.constant 0 : i32
    %0 = arith.cmpi eq, %arg0, %c0_i32 : i32
    %1 = arith.extui %0 : i1 to i32
    %c0_i32_0 = arith.constant 0 : i32
    %2 = arith.cmpi ne, %1, %c0_i32_0 : i32
    scf.if %2 {
      %cst_8 = arith.constant 0.000000e+00 : f32
      %12 = vector.broadcast %cst_8 : f32 to vector<16x1xf32>
      %c0_9 = arith.constant 0 : index
      %c0_10 = arith.constant 0 : index
      %13 = vector.load %arg2[%c0_9, %c0_10] : memref<16x1xf32, #tpu.memory_space<vmem>>, vector<16x1xf32>
      tpu.vector_store %arg2[%c0_9, %c0_10], %12 {strides = array<i32>} : memref<16x1xf32, #tpu.memory_space<vmem>>, vector<16x1xf32>,
    } else {
    }
    %c0 = arith.constant 0 : index
    %c0_1 = arith.constant 0 : index
    %3 = vector.load %arg2[%c0, %c0_1] : memref<16x1xf32, #tpu.memory_space<vmem>>, vector<16x1xf32>
    %c0_2 = arith.constant 0 : index
    %c0_3 = arith.constant 0 : index
    %4 = vector.load %arg1[%c0_2, %c0_3] : memref<16x256xf32, #tpu.memory_space<vmem>>, vector<16x256xf32>
    %cst = arith.constant dense<0.000000e+00> : vector<16xf32>
    %5 = vector.multi_reduction <add>, %4, %cst [1] : vector<16x256xf32> to vector<16xf32>
    %6 = vector.shape_cast %5 : vector<16xf32> to vector<16x1xf32>
    %7 = arith.addf %3, %6 : vector<16x1xf32>
    %c0_4 = arith.constant 0 : index
    %c0_5 = arith.constant 0 : index
    %8 = vector.load %arg2[%c0_4, %c0_5] : memref<16x1xf32, #tpu.memory_space<vmem>>, vector<16x1xf32>
    tpu.vector_store %arg2[%c0_4, %c0_5], %7 {strides = array<i32>} : memref<16x1xf32, #tpu.memory_space<vmem>>, vector<16x1xf32>,
    %c0_i32_6 = arith.constant 0 : i32
    %9 = arith.cmpi eq, %arg0, %c0_i32_6 : i32
    %10 = arith.extui %9 : i1 to i32
    %c0_i32_7 = arith.constant 0 : i32
    %11 = arith.cmpi ne, %10, %c0_i32_7 : i32
    scf.if %11 {
      %c0_8 = arith.constant 0 : index
      %c0_9 = arith.constant 0 : index
      %12 = vector.load %arg2[%c0_8, %c0_9] : memref<16x1xf32, #tpu.memory_space<vmem>>, vector<16x1xf32>
      %cst_10 = arith.constant 3.906250e-03 : f32
      %13 = vector.broadcast %cst_10 : f32 to vector<16x1xf32>
      %14 = arith.mulf %12, %13 : vector<16x1xf32>
      %c0_11 = arith.constant 0 : index
      %c0_12 = arith.constant 0 : index
      %15 = vector.load %arg2[%c0_11, %c0_12] : memref<16x1xf32, #tpu.memory_space<vmem>>, vector<16x1xf32>
      tpu.vector_store %arg2[%c0_11, %c0_12], %14 {strides = array<i32>} : memref<16x1xf32, #tpu.memory_space<vmem>>, vector<16x1xf32>,
    } else {
    }
    return
  }
  func.func @transform_0(%arg0: i32) -> (i32, i32) {
    %c0_i32 = arith.constant 0 : i32
    %c0_i32_0 = arith.constant 0 : i32
    return %c0_i32, %arg0 : i32, i32
  }
  func.func @transform_1(%arg0: i32) -> (i32, i32) {
    %c0_i32 = arith.constant 0 : i32
    %c0_i32_0 = arith.constant 0 : i32
    %c0_i32_1 = arith.constant 0 : i32
    return %c0_i32, %c0_i32_0 : i32, i32
  }
}

</mosaic_0001>

<llo_original>
// kernel: tpu_custom_call.1
$region0: #{tpu_custom_call.1}
  #allocation0 [shape = 'u32[]', space=smem, size = 0x4, offset = 0x4, fixed_abs, tag = 'smem constant byte address 0x4 - core index']
  #allocation1 [shape = 'u32[144,128]{1,0:T(1,128)}', space=vmem, size = 0x12000, scoped, tag = 'internal scratch']
  %s0 = inlined_call_operand.hbm [shape: f32[16,256], index: 0, kind: input, shape index: {}]
  %s1 = inlined_call_operand.vmem [shape: f32[16,1], index: 1, kind: output, shape index: {}]
  %s2 = sld [smem:[#allocation0]]
  $region26: #{tpu_custom_call.1} parent=0
    _
  %s4 = ssub.s32 1, %s2
  %s5 = scalar_select 0, %s4, %s2
  $region1: #{tpu_custom_call.1} parent=0
    #allocation2 [shape = 'u8[16384]{0}', space=vmem, size = 0x4000, scoped, tag = 'input window, operand 0, single buffered']
    #allocation3 [shape = 's32[1]{0}', space=sflag, size = 0x4, scoped, tag = 'scoped memory for tpu_custom_call.1']
    %6 = vsyncpa [#allocation3], 0
    // Predicated region
    $region2: #{tpu_custom_call.1} parent=1 // pred_check
      _
    $region3: #{tpu_custom_call.1} parent=1 // pred_check_branch
      %8 = sbr.rel (0) target = $region5
    $region4: #{tpu_custom_call.1} parent=1 // pred_region
      %s10 = ssub.s32 512, 512
      %11 = vsyncadd [#allocation3], %s10
      %s12 = sshll.u32 [#allocation2], 4
      %s13 = int_to_ptr.vmem [resolvable:$true] %s12
      %18 = dma.hbm_to_vmem [thread:$0]  %s0, 512, %s13, [#allocation3], 256, 256, 16
    $region5: #{tpu_custom_call.1} parent=1 // pred_fallthru
      _
    // Predicated region
    $region6: #{tpu_custom_call.1} parent=1 // pred_check
      _
    $region7: #{tpu_custom_call.1} parent=1 // pred_check_branch
      %20 = sbr.rel (0) target = $region9
    $region8: #{tpu_custom_call.1} parent=1 // pred_region
      %21 = dma.done [#allocation3], 512
    $region9: #{tpu_custom_call.1} parent=1 // pred_fallthru
      _
    %p22 = scmp.eq.s32.totalorder 0, 0
    // Predicated region
    $region10: #{tpu_custom_call.1} parent=1 // pred_check
      %p23 = pneg %p22
    $region11: #{tpu_custom_call.1} parent=1 // pred_check_branch
      %25 = sbr.rel (%p23) target = $region13
    $region12: #{tpu_custom_call.1} parent=1 // pred_region
      %vm26 = vcmask 7168
      %27 = vst.msk [vmem:[%s1] sm:$0xff] %vm26, 0.0
      %28 = vst.msk [vmem:[%s1 + $0x8] sm:$0xff] %vm26, 0.0
    $region13: #{tpu_custom_call.1} parent=1 // pred_fallthru
      _
    %v29 = vld [vmem:[%s1] sm:$0xff]
    %v30 = vld [vmem:[%s1 + $0x8] sm:$0xff]
    %v31 = vld [vmem:[#allocation2] sm:$0xff]
    %v32 = vld [vmem:[#allocation2 + $0x8] sm:$0xff]
    %v33 = vld [vmem:[#allocation2 + $0x10] sm:$0xff]
    %v34 = vld [vmem:[#allocation2 + $0x18] sm:$0xff]
    %v35 = vadd.f32 %v31, %v32
    %36 = vadd.xlane.f32.xlu0 %v35
    %v37 = vpop.xlane.xlu0 %36
    %v38 = vadd.f32 %v33, %v34
    %39 = vadd.xlane.f32.xlu0 %v38
    %v40 = vpop.xlane.xlu0 %39
    %v41 = vadd.f32 %v29, %v37
    %v42 = vadd.f32 %v30, %v40
    %vm43 = vcmask 7168
    %44 = vst.msk [vmem:[%s1] sm:$0xff] %vm43, %v41
    %45 = vst.msk [vmem:[%s1 + $0x8] sm:$0xff] %vm43, %v42
    // Predicated region
    $region14: #{tpu_custom_call.1} parent=1 // pred_check
      %p46 = pneg %p22
    $region15: #{tpu_custom_call.1} parent=1 // pred_check_branch
      %48 = sbr.rel (%p46) target = $region17
    $region16: #{tpu_custom_call.1} parent=1 // pred_region
      %v49 = vld [vmem:[%s1] sm:$0xff]
      %v50 = vld [vmem:[%s1 + $0x8] sm:$0xff]
      %v51 = vmul.f32 %v49, 0.00390625
      %v52 = vmul.f32 %v50, 0.00390625
      %53 = vst.msk [vmem:[%s1] sm:$0xff] %vm43, %v51
      %54 = vst.msk [vmem:[%s1 + $0x8] sm:$0xff] %vm43, %v52
    $region17: #{tpu_custom_call.1} parent=1 // pred_fallthru
      _
    // Predicated region
    $region18: #{tpu_custom_call.1} parent=1 // pred_check
      _
    $region19: #{tpu_custom_call.1} parent=1 // pred_check_branch
      %56 = sbr.rel (0) target = $region21
    $region20: #{tpu_custom_call.1} parent=1 // pred_region
      _
    $region21: #{tpu_custom_call.1} parent=1 // pred_fallthru
      _
    // Predicated region
    $region22: #{tpu_custom_call.1} parent=1 // pred_check
      _
    $region23: #{tpu_custom_call.1} parent=1 // pred_check_branch
      %58 = sbr.rel (0) target = $region25
    $region24: #{tpu_custom_call.1} parent=1 // pred_region
      _
    $region25: #{tpu_custom_call.1} parent=1 // pred_fallthru
      _
    %59 = vsyncpa [#allocation3], 1

</llo_original>
